<compile_context>
chip_gen: v7x
topology: tpu7x:2x2x1
jax: 0.10.0
libtpu: 0.0.40
codegen_flags: <defaults>
</compile_context>

<pallas_src>
import jax
import jax.numpy as jnp
from jax.experimental import pallas as pl
from jax.experimental.pallas import tpu as pltpu

HIDDEN = 256          # hidden_layer_size
FEAT = 128 * 2        # input / output feature size (== 256)


def _fused_chain_kernel(x_ref, w_ref, o_ref):
    """Fused chain of bias-free linear layers for one batch tile.

    x_ref: [tb, 256] activation tile.
    w_ref: [L, 256, 256] full weight stack, VMEM-resident (constant index_map).
    o_ref: [tb, 256] output tile.

    L is a trace-time constant and small, so the chain is statically unrolled;
    the activation lives in vregs between MXU matmuls instead of bouncing
    through VMEM scratch.
    """
    h = x_ref[...]
    for l in range(w_ref.shape[0]):          # static unroll over the stack
        h = jnp.dot(h, w_ref[l], preferred_element_type=jnp.float32)
    o_ref[...] = h


def linear_inverse_pallas(x_complex, w_stack, *, batch_tile=256):
    """x_complex: complex64 [B, 128]; w_stack: float32 [L, 256, 256] (in, out)."""
    B = x_complex.shape[0]
    L = w_stack.shape[0]

    # Glue: complex -> concatenated real/imag features.
    h0 = jnp.concatenate([jnp.real(x_complex), jnp.imag(x_complex)],
                         axis=1).astype(jnp.float32)              # [B, 256]

    # Batch tiling: rows per tile (multiple of 8 for sublane alignment); pad B
    # up to a whole number of tiles. For small B this is a single grid step.
    if B >= batch_tile:
        tb = batch_tile
    else:
        tb = max(8, ((B + 7) // 8) * 8)
    Bp = ((B + tb - 1) // tb) * tb
    if Bp != B:
        h0 = jnp.pad(h0, ((0, Bp - B), (0, 0)))

    # TODO(synk): for very deep stacks (L >~ 100 on v7x's 64 MiB VMEM) chunk
    # the weight stack behind a manual double-buffered prefetch instead of
    # keeping it fully resident.
    out = pl.pallas_call(
        _fused_chain_kernel,
        out_shape=jax.ShapeDtypeStruct((Bp, FEAT), jnp.float32),
        grid_spec=pltpu.PrefetchScalarGridSpec(
            num_scalar_prefetch=0,
            grid=(Bp // tb,),
            in_specs=[
                # per-tile activations
                pl.BlockSpec((tb, FEAT), lambda i: (i, 0)),
                # full weight stack, resident across all batch tiles
                pl.BlockSpec((L, HIDDEN, HIDDEN), lambda i: (0, 0, 0)),
            ],
            out_specs=pl.BlockSpec((tb, FEAT), lambda i: (i, 0)),
        ),
        compiler_params=pltpu.CompilerParams(
            dimension_semantics=("parallel",)),
    )(h0, w_stack)

    out = out[:B]

    # Glue: split back into real/imag halves and rebuild the complex output.
    return jax.lax.complex(out[:, :128], out[:, 128:])


def linear_inverse_ref(x_complex, w_stack):
    """Pure-JAX reference for correctness checking."""
    h = jnp.concatenate([jnp.real(x_complex), jnp.imag(x_complex)],
                        axis=1).astype(jnp.float32)
    for l in range(w_stack.shape[0]):
        h = h @ w_stack[l]
    return jax.lax.complex(h[:, :128], h[:, 128:])


def make_params(key, num_layers):
    """Deterministic synthetic weights matching nn.Linear (bias=False) shapes.

    PyTorch stores weights as (out_features, in_features); generate in that
    convention and transpose to (in, out) for the kernel. All layers here are
    256x256 (input 256->256, hidden 256->256, final 256->256), so they stack.
    """
    L = num_layers + 2
    keys = jax.random.split(key, L)
    bound = 1.0 / jnp.sqrt(jnp.float32(HIDDEN))
    ws = []
    for k in keys:
        w_torch_layout = jax.random.uniform(
            k, (HIDDEN, HIDDEN), jnp.float32, minval=-bound, maxval=bound)
        ws.append(w_torch_layout.T)  # (in, out)
    return jnp.stack(ws, axis=0)     # [L, 256, 256]


if __name__ == "__main__":
    key = jax.random.PRNGKey(0)
    k_x, k_w = jax.random.split(key)

    B = 8
    num_layers = 3

    x_real = jax.random.normal(k_x, (B, 128), jnp.float32)
    x_imag = jax.random.normal(jax.random.fold_in(k_x, 1), (B, 128), jnp.float32)
    x = jax.lax.complex(x_real, x_imag)                    # complex64 [B, 128]

    w_stack = make_params(k_w, num_layers)                 # [num_layers+2, 256, 256]

    y = linear_inverse_pallas(x, w_stack)
    y = jax.block_until_ready(y)

    y_ref = linear_inverse_ref(x, w_stack)
    assert y.shape == (B, 128) and y.dtype == jnp.complex64
    assert jnp.allclose(y, y_ref, atol=1e-4, rtol=1e-4)

    print("KERNEL_OK")
</pallas_src>

<mosaic_0001>
module attributes {stable_mosaic.version = 11 : i64} {
  func.func @_fused_chain_kernel(%arg0: i32, %arg1: memref<8x256xf32, #tpu.memory_space<vmem>>, %arg2: memref<5x256x256xf32, #tpu.memory_space<vmem>>, %arg3: memref<8x256xf32, #tpu.memory_space<vmem>>) attributes {dimension_semantics = [#tpu.dimension_semantics<parallel>], iteration_bounds = array<i64: 1>, scalar_prefetch = 0 : i64, scratch_operands = 0 : i64, tpu.core_type = #tpu.core_type<tc>, window_params = [{transform_indices = @transform_0, window_bounds = array<i64: 8, 256>}, {pipeline_mode = #tpu.pipeline_mode<synchronous>, transform_indices = @transform_1, window_bounds = array<i64: 5, 256, 256>}, {transform_indices = @transform_2, window_bounds = array<i64: 8, 256>}]} {
    %c0 = arith.constant 0 : index
    %c0_0 = arith.constant 0 : index
    %0 = vector.load %arg1[%c0, %c0_0] : memref<8x256xf32, #tpu.memory_space<vmem>>, vector<8x256xf32>
    %c0_1 = arith.constant 0 : index
    %c0_2 = arith.constant 0 : index
    %c0_3 = arith.constant 0 : index
    %1 = vector.load %arg2[%c0_1, %c0_2, %c0_3] : memref<5x256x256xf32, #tpu.memory_space<vmem>>, vector<1x256x256xf32>
    %2 = vector.shape_cast %1 : vector<1x256x256xf32> to vector<256x256xf32>
    %cst = arith.constant dense<0.000000e+00> : vector<8x256xf32>
    %3 = tpu.matmul %0, %2, %cst {dimension_numbers = #tpu.dot_dimension_numbers<[1], [0], [0], [1], [0, 0, 1, 1], [], []>} : vector<8x256xf32>, vector<256x256xf32>, vector<8x256xf32> -> vector<8x256xf32>
    %c1 = arith.constant 1 : index
    %c0_4 = arith.constant 0 : index
    %c0_5 = arith.constant 0 : index
    %4 = vector.load %arg2[%c1, %c0_4, %c0_5] : memref<5x256x256xf32, #tpu.memory_space<vmem>>, vector<1x256x256xf32>
    %5 = vector.shape_cast %4 : vector<1x256x256xf32> to vector<256x256xf32>
    %cst_6 = arith.constant dense<0.000000e+00> : vector<8x256xf32>
    %6 = tpu.matmul %3, %5, %cst_6 {dimension_numbers = #tpu.dot_dimension_numbers<[1], [0], [0], [1], [0, 0, 1, 1], [], []>} : vector<8x256xf32>, vector<256x256xf32>, vector<8x256xf32> -> vector<8x256xf32>
    %c2 = arith.constant 2 : index
    %c0_7 = arith.constant 0 : index
    %c0_8 = arith.constant 0 : index
    %7 = vector.load %arg2[%c2, %c0_7, %c0_8] : memref<5x256x256xf32, #tpu.memory_space<vmem>>, vector<1x256x256xf32>
    %8 = vector.shape_cast %7 : vector<1x256x256xf32> to vector<256x256xf32>
    %cst_9 = arith.constant dense<0.000000e+00> : vector<8x256xf32>
    %9 = tpu.matmul %6, %8, %cst_9 {dimension_numbers = #tpu.dot_dimension_numbers<[1], [0], [0], [1], [0, 0, 1, 1], [], []>} : vector<8x256xf32>, vector<256x256xf32>, vector<8x256xf32> -> vector<8x256xf32>
    %c3 = arith.constant 3 : index
    %c0_10 = arith.constant 0 : index
    %c0_11 = arith.constant 0 : index
    %10 = vector.load %arg2[%c3, %c0_10, %c0_11] : memref<5x256x256xf32, #tpu.memory_space<vmem>>, vector<1x256x256xf32>
    %11 = vector.shape_cast %10 : vector<1x256x256xf32> to vector<256x256xf32>
    %cst_12 = arith.constant dense<0.000000e+00> : vector<8x256xf32>
    %12 = tpu.matmul %9, %11, %cst_12 {dimension_numbers = #tpu.dot_dimension_numbers<[1], [0], [0], [1], [0, 0, 1, 1], [], []>} : vector<8x256xf32>, vector<256x256xf32>, vector<8x256xf32> -> vector<8x256xf32>
    %c4 = arith.constant 4 : index
    %c0_13 = arith.constant 0 : index
    %c0_14 = arith.constant 0 : index
    %13 = vector.load %arg2[%c4, %c0_13, %c0_14] : memref<5x256x256xf32, #tpu.memory_space<vmem>>, vector<1x256x256xf32>
    %14 = vector.shape_cast %13 : vector<1x256x256xf32> to vector<256x256xf32>
    %cst_15 = arith.constant dense<0.000000e+00> : vector<8x256xf32>
    %15 = tpu.matmul %12, %14, %cst_15 {dimension_numbers = #tpu.dot_dimension_numbers<[1], [0], [0], [1], [0, 0, 1, 1], [], []>} : vector<8x256xf32>, vector<256x256xf32>, vector<8x256xf32> -> vector<8x256xf32>
    %c0_16 = arith.constant 0 : index
    %c0_17 = arith.constant 0 : index
    %16 = vector.load %arg3[%c0_16, %c0_17] : memref<8x256xf32, #tpu.memory_space<vmem>>, vector<8x256xf32>
    tpu.vector_store %arg3[%c0_16, %c0_17], %15 {strides = array<i32>} : memref<8x256xf32, #tpu.memory_space<vmem>>, vector<8x256xf32>,
    return
  }
  func.func @transform_0(%arg0: i32) -> (i32, i32) {
    %c0_i32 = arith.constant 0 : i32
    %c0_i32_0 = arith.constant 0 : i32
    return %arg0, %c0_i32 : i32, i32
  }
  func.func @transform_1(%arg0: i32) -> (i32, i32, i32) {
    %c0_i32 = arith.constant 0 : i32
    %c0_i32_0 = arith.constant 0 : i32
    %c0_i32_1 = arith.constant 0 : i32
    %c0_i32_2 = arith.constant 0 : i32
    return %c0_i32, %c0_i32_0, %c0_i32_1 : i32, i32, i32
  }
  func.func @transform_2(%arg0: i32) -> (i32, i32) {
    %c0_i32 = arith.constant 0 : i32
    %c0_i32_0 = arith.constant 0 : i32
    return %arg0, %c0_i32 : i32, i32
  }
}

</mosaic_0001>

<llo_original>
// kernel: tpu_custom_call.1
$region0: #{tpu_custom_call.1}
  #allocation0 [shape = 'u32[]', space=smem, size = 0x4, offset = 0x4, fixed_abs, tag = 'smem constant byte address 0x4 - core index']
  #allocation1 [shape = 'u32[144,128]{1,0:T(1,128)}', space=vmem, size = 0x12000, scoped, tag = 'internal scratch']
  %s0 = inlined_call_operand.hbm [shape: f32[8,256], index: 0, kind: input, shape index: {}]
  %s1 = inlined_call_operand.hbm [shape: f32[5,256,256], index: 1, kind: input, shape index: {}]
  %s2 = inlined_call_operand.hbm [shape: f32[8,256], index: 2, kind: output, shape index: {}]
  %s3 = sld [smem:[#allocation0]]
  $region26: #{tpu_custom_call.1} parent=0
    _
  %s5 = ssub.s32 1, %s3
  %s6 = scalar_select 0, %s5, %s3
  $region1: #{tpu_custom_call.1} parent=0
    #allocation2 [shape = 'u8[8192]{0}', space=vmem, size = 0x2000, scoped, tag = 'input window, operand 0, single buffered']
    #allocation3 [shape = 's32[1]{0}', space=sflag, size = 0x4, scoped, tag = 'scoped memory for tpu_custom_call.1']
    #allocation4 [shape = 's32[1]{0}', space=sflag, size = 0x4, scoped, tag = 'scoped memory for tpu_custom_call.1']
    #allocation5 [shape = 'u8[1310720]{0}', space=vmem, size = 0x140000, scoped, tag = 'input window, operand 1, single buffered']
    #allocation6 [shape = 's32[1]{0}', space=sflag, size = 0x4, scoped, tag = 'scoped memory for tpu_custom_call.1']
    #allocation7 [shape = 'u8[8192]{0}', space=vmem, size = 0x2000, scoped, tag = 'output window, operand 0, single buffered']
    %7 = vsyncpa [#allocation3], 0
    %8 = vsyncpa [#allocation6], 0
    %9 = vsyncpa [#allocation4], 0
    // Predicated region
    $region2: #{tpu_custom_call.1} parent=1 // pred_check
      _
    $region3: #{tpu_custom_call.1} parent=1 // pred_check_branch
      %11 = sbr.rel (0) target = $region5
    $region4: #{tpu_custom_call.1} parent=1 // pred_region
      %s13 = ssub.s32 256, 256
      %14 = vsyncadd [#allocation3], %s13
      %s16 = sshll.u32 [#allocation2], 4
      %s17 = int_to_ptr.vmem [resolvable:$true] %s16
      %19 = dma.hbm_to_vmem [thread:$0]  %s0, 256, %s17, [#allocation3]
    $region5: #{tpu_custom_call.1} parent=1 // pred_fallthru
      _
    // Predicated region
    $region6: #{tpu_custom_call.1} parent=1 // pred_check
      _
    $region7: #{tpu_custom_call.1} parent=1 // pred_check_branch
      %21 = sbr.rel (0) target = $region9
    $region8: #{tpu_custom_call.1} parent=1 // pred_region
      %s23 = ssub.s32 40960, 40960
      %24 = vsyncadd [#allocation6], %s23
      %s25 = sshll.u32 [#allocation5], 4
      %s26 = int_to_ptr.vmem [resolvable:$true] %s25
      %31 = dma.hbm_to_vmem [thread:$0]  %s1, 40960, %s26, [#allocation6], 256, 256, 16
    $region9: #{tpu_custom_call.1} parent=1 // pred_fallthru
      _
    // Predicated region
    $region10: #{tpu_custom_call.1} parent=1 // pred_check
      _
    $region11: #{tpu_custom_call.1} parent=1 // pred_check_branch
      %33 = sbr.rel (0) target = $region13
    $region12: #{tpu_custom_call.1} parent=1 // pred_region
      %34 = dma.done [#allocation3], 256
    $region13: #{tpu_custom_call.1} parent=1 // pred_fallthru
      _
    // Predicated region
    $region14: #{tpu_custom_call.1} parent=1 // pred_check
      _
    $region15: #{tpu_custom_call.1} parent=1 // pred_check_branch
      %36 = sbr.rel (0) target = $region17
    $region16: #{tpu_custom_call.1} parent=1 // pred_region
      %37 = dma.done [#allocation6], 40960
    $region17: #{tpu_custom_call.1} parent=1 // pred_fallthru
      _
    %v38 = vld [vmem:[#allocation2] sm:$0xff]
    %v39 = vld [vmem:[#allocation2 + $0x8] sm:$0xff]
    %v40 = vld [vmem:[#allocation5] sm:$0xff]
    %v41 = vld [vmem:[#allocation5 + $0x8] sm:$0xff]
    %v42 = vld [vmem:[#allocation5 + $0x10] sm:$0xff]
    %v43 = vld [vmem:[#allocation5 + $0x18] sm:$0xff]
    %v44 = vld [vmem:[#allocation5 + $0x20] sm:$0xff]
    %v45 = vld [vmem:[#allocation5 + $0x28] sm:$0xff]
    %v46 = vld [vmem:[#allocation5 + $0x30] sm:$0xff]
    %v47 = vld [vmem:[#allocation5 + $0x38] sm:$0xff]
    %v48 = vld [vmem:[#allocation5 + $0x40] sm:$0xff]
    %v49 = vld [vmem:[#allocation5 + $0x48] sm:$0xff]
    %v50 = vld [vmem:[#allocation5 + $0x50] sm:$0xff]
    %v51 = vld [vmem:[#allocation5 + $0x58] sm:$0xff]
    %v52 = vld [vmem:[#allocation5 + $0x60] sm:$0xff]
    %v53 = vld [vmem:[#allocation5 + $0x68] sm:$0xff]
    %v54 = vld [vmem:[#allocation5 + $0x70] sm:$0xff]
    %v55 = vld [vmem:[#allocation5 + $0x78] sm:$0xff]
    %v56 = vld [vmem:[#allocation5 + $0x80] sm:$0xff]
    %v57 = vld [vmem:[#allocation5 + $0x88] sm:$0xff]
    %v58 = vld [vmem:[#allocation5 + $0x90] sm:$0xff]
    %v59 = vld [vmem:[#allocation5 + $0x98] sm:$0xff]
    %v60 = vld [vmem:[#allocation5 + $0xa0] sm:$0xff]
    %v61 = vld [vmem:[#allocation5 + $0xa8] sm:$0xff]
    %v62 = vld [vmem:[#allocation5 + $0xb0] sm:$0xff]
    %v63 = vld [vmem:[#allocation5 + $0xb8] sm:$0xff]
    %v64 = vld [vmem:[#allocation5 + $0xc0] sm:$0xff]
    %v65 = vld [vmem:[#allocation5 + $0xc8] sm:$0xff]
    %v66 = vld [vmem:[#allocation5 + $0xd0] sm:$0xff]
    %v67 = vld [vmem:[#allocation5 + $0xd8] sm:$0xff]
    %v68 = vld [vmem:[#allocation5 + $0xe0] sm:$0xff]
    %v69 = vld [vmem:[#allocation5 + $0xe8] sm:$0xff]
    %v70 = vld [vmem:[#allocation5 + $0xf0] sm:$0xff]
    %v71 = vld [vmem:[#allocation5 + $0xf8] sm:$0xff]
    %v72 = vld [vmem:[#allocation5 + $0x100] sm:$0xff]
    %v73 = vld [vmem:[#allocation5 + $0x108] sm:$0xff]
    %v74 = vld [vmem:[#allocation5 + $0x110] sm:$0xff]
    %v75 = vld [vmem:[#allocation5 + $0x118] sm:$0xff]
    %v76 = vld [vmem:[#allocation5 + $0x120] sm:$0xff]
    %v77 = vld [vmem:[#allocation5 + $0x128] sm:$0xff]
    %v78 = vld [vmem:[#allocation5 + $0x130] sm:$0xff]
    %v79 = vld [vmem:[#allocation5 + $0x138] sm:$0xff]
    %v80 = vld [vmem:[#allocation5 + $0x140] sm:$0xff]
    %v81 = vld [vmem:[#allocation5 + $0x148] sm:$0xff]
    %v82 = vld [vmem:[#allocation5 + $0x150] sm:$0xff]
    %v83 = vld [vmem:[#allocation5 + $0x158] sm:$0xff]
    %v84 = vld [vmem:[#allocation5 + $0x160] sm:$0xff]
    %v85 = vld [vmem:[#allocation5 + $0x168] sm:$0xff]
    %v86 = vld [vmem:[#allocation5 + $0x170] sm:$0xff]
    %v87 = vld [vmem:[#allocation5 + $0x178] sm:$0xff]
    %v88 = vld [vmem:[#allocation5 + $0x180] sm:$0xff]
    %v89 = vld [vmem:[#allocation5 + $0x188] sm:$0xff]
    %v90 = vld [vmem:[#allocation5 + $0x190] sm:$0xff]
    %v91 = vld [vmem:[#allocation5 + $0x198] sm:$0xff]
    %v92 = vld [vmem:[#allocation5 + $0x1a0] sm:$0xff]
    %v93 = vld [vmem:[#allocation5 + $0x1a8] sm:$0xff]
    %v94 = vld [vmem:[#allocation5 + $0x1b0] sm:$0xff]
    %v95 = vld [vmem:[#allocation5 + $0x1b8] sm:$0xff]
    %v96 = vld [vmem:[#allocation5 + $0x1c0] sm:$0xff]
    %v97 = vld [vmem:[#allocation5 + $0x1c8] sm:$0xff]
    %v98 = vld [vmem:[#allocation5 + $0x1d0] sm:$0xff]
    %v99 = vld [vmem:[#allocation5 + $0x1d8] sm:$0xff]
    %v100 = vld [vmem:[#allocation5 + $0x1e0] sm:$0xff]
    %v101 = vld [vmem:[#allocation5 + $0x1e8] sm:$0xff]
    %v102 = vld [vmem:[#allocation5 + $0x1f0] sm:$0xff]
    %v103 = vld [vmem:[#allocation5 + $0x1f8] sm:$0xff]
    %104 = vmatprep.subr.mxu0 %v41
    %105 = vmatpush1.msra.mxu0 %v40
    %106 = vmatprep.subr.mxu0 %v43
    %107 = vmatpush1.msra.mxu0 %v42
    %108 = vmatprep.subr.mxu0 %v45
    %109 = vmatpush1.msra.mxu0 %v44
    %110 = vmatprep.subr.mxu0 %v47
    %111 = vmatpush1.msra.mxu0 %v46
    %112 = vmatprep.subr.mxu0 %v49
    %113 = vmatpush1.msra.mxu0 %v48
    %114 = vmatprep.subr.mxu0 %v51
    %115 = vmatpush1.msra.mxu0 %v50
    %116 = vmatprep.subr.mxu0 %v53
    %117 = vmatpush1.msra.mxu0 %v52
    %118 = vmatprep.subr.mxu0 %v55
    %119 = vmatpush1.msra.mxu0 %v54
    %120 = vmatprep.subr.mxu0 %v57
    %121 = vmatpush1.msra.mxu0 %v56
    %122 = vmatprep.subr.mxu0 %v59
    %123 = vmatpush1.msra.mxu0 %v58
    %124 = vmatprep.subr.mxu0 %v61
    %125 = vmatpush1.msra.mxu0 %v60
    %126 = vmatprep.subr.mxu0 %v63
    %127 = vmatpush1.msra.mxu0 %v62
    %128 = vmatprep.subr.mxu0 %v65
    %129 = vmatpush1.msra.mxu0 %v64
    %130 = vmatprep.subr.mxu0 %v67
    %131 = vmatpush1.msra.mxu0 %v66
    %132 = vmatprep.subr.mxu0 %v69
    %133 = vmatpush1.msra.mxu0 %v68
    %134 = vmatprep.subr.mxu0 %v71
    %135 = vmatpush1.msra.mxu0 %v70
    %136 = vmatprep.subr.mxu0 %v73
    %137 = vmatpush1.msra.mxu0 %v72
    %138 = vmatprep.subr.mxu0 %v75
    %139 = vmatpush1.msra.mxu0 %v74
    %140 = vmatprep.subr.mxu0 %v77
    %141 = vmatpush1.msra.mxu0 %v76
    %142 = vmatprep.subr.mxu0 %v79
    %143 = vmatpush1.msra.mxu0 %v78
    %144 = vmatprep.subr.mxu0 %v81
    %145 = vmatpush1.msra.mxu0 %v80
    %146 = vmatprep.subr.mxu0 %v83
    %147 = vmatpush1.msra.mxu0 %v82
    %148 = vmatprep.subr.mxu0 %v85
    %149 = vmatpush1.msra.mxu0 %v84
    %150 = vmatprep.subr.mxu0 %v87
    %151 = vmatpush1.msra.mxu0 %v86
    %152 = vmatprep.subr.mxu0 %v89
    %153 = vmatpush1.msra.mxu0 %v88
    %154 = vmatprep.subr.mxu0 %v91
    %155 = vmatpush1.msra.mxu0 %v90
    %156 = vmatprep.subr.mxu0 %v93
    %157 = vmatpush1.msra.mxu0 %v92
    %158 = vmatprep.subr.mxu0 %v95
    %159 = vmatpush1.msra.mxu0 %v94
    %160 = vmatprep.subr.mxu0 %v97
    %161 = vmatpush1.msra.mxu0 %v96
    %162 = vmatprep.subr.mxu0 %v99
    %163 = vmatpush1.msra.mxu0 %v98
    %164 = vmatprep.subr.mxu0 %v101
    %165 = vmatpush1.msra.mxu0 %v100
    %166 = vmatprep.subr.mxu0 %v103
    %167 = vmatpush1.msra.mxu0 %v102
    %168 = vmatprep.mubr.f32.mxu0 %v39
    %169 = vmatmul.mubr.f32.gmra.mrb[0].mxu0 %v38
    %v170 = vpop.f32.mrb[0].mxu0
    %v171 = vadd.f32 0.0, %v170
    %v172 = vpop.f32.mrb[0].mxu0
    %v173 = vadd.f32 0.0, %v172
    %174 = vdwg.mxu0
    %s175 = scalar_lea.vmem [#allocation5], 512
    %v176 = vld [vmem:[%s175] sm:$0xff]
    %v177 = vld [vmem:[%s175 + $0x8] sm:$0xff]
    %v178 = vld [vmem:[%s175 + $0x10] sm:$0xff]
    %v179 = vld [vmem:[%s175 + $0x18] sm:$0xff]
    %v180 = vld [vmem:[%s175 + $0x20] sm:$0xff]
    %v181 = vld [vmem:[%s175 + $0x28] sm:$0xff]
    %v182 = vld [vmem:[%s175 + $0x30] sm:$0xff]
    %v183 = vld [vmem:[%s175 + $0x38] sm:$0xff]
    %v184 = vld [vmem:[%s175 + $0x40] sm:$0xff]
    %v185 = vld [vmem:[%s175 + $0x48] sm:$0xff]
    %v186 = vld [vmem:[%s175 + $0x50] sm:$0xff]
    %v187 = vld [vmem:[%s175 + $0x58] sm:$0xff]
    %v188 = vld [vmem:[%s175 + $0x60] sm:$0xff]
    %v189 = vld [vmem:[%s175 + $0x68] sm:$0xff]
    %v190 = vld [vmem:[%s175 + $0x70] sm:$0xff]
    %v191 = vld [vmem:[%s175 + $0x78] sm:$0xff]
    %v192 = vld [vmem:[%s175 + $0x80] sm:$0xff]
    %v193 = vld [vmem:[%s175 + $0x88] sm:$0xff]
    %v194 = vld [vmem:[%s175 + $0x90] sm:$0xff]
    %v195 = vld [vmem:[%s175 + $0x98] sm:$0xff]
    %v196 = vld [vmem:[%s175 + $0xa0] sm:$0xff]
    %v197 = vld [vmem:[%s175 + $0xa8] sm:$0xff]
    %v198 = vld [vmem:[%s175 + $0xb0] sm:$0xff]
    %v199 = vld [vmem:[%s175 + $0xb8] sm:$0xff]
    %v200 = vld [vmem:[%s175 + $0xc0] sm:$0xff]
    %v201 = vld [vmem:[%s175 + $0xc8] sm:$0xff]
    %v202 = vld [vmem:[%s175 + $0xd0] sm:$0xff]
    %v203 = vld [vmem:[%s175 + $0xd8] sm:$0xff]
    %v204 = vld [vmem:[%s175 + $0xe0] sm:$0xff]
    %v205 = vld [vmem:[%s175 + $0xe8] sm:$0xff]
    %v206 = vld [vmem:[%s175 + $0xf0] sm:$0xff]
    %v207 = vld [vmem:[%s175 + $0xf8] sm:$0xff]
    %v208 = vld [vmem:[%s175 + $0x100] sm:$0xff]
    %v209 = vld [vmem:[%s175 + $0x108] sm:$0xff]
    %v210 = vld [vmem:[%s175 + $0x110] sm:$0xff]
    %v211 = vld [vmem:[%s175 + $0x118] sm:$0xff]
    %v212 = vld [vmem:[%s175 + $0x120] sm:$0xff]
    %v213 = vld [vmem:[%s175 + $0x128] sm:$0xff]
    %v214 = vld [vmem:[%s175 + $0x130] sm:$0xff]
    %v215 = vld [vmem:[%s175 + $0x138] sm:$0xff]
    %v216 = vld [vmem:[%s175 + $0x140] sm:$0xff]
    %v217 = vld [vmem:[%s175 + $0x148] sm:$0xff]
    %v218 = vld [vmem:[%s175 + $0x150] sm:$0xff]
    %v219 = vld [vmem:[%s175 + $0x158] sm:$0xff]
    %v220 = vld [vmem:[%s175 + $0x160] sm:$0xff]
    %v221 = vld [vmem:[%s175 + $0x168] sm:$0xff]
    %v222 = vld [vmem:[%s175 + $0x170] sm:$0xff]
    %v223 = vld [vmem:[%s175 + $0x178] sm:$0xff]
    %v224 = vld [vmem:[%s175 + $0x180] sm:$0xff]
    %v225 = vld [vmem:[%s175 + $0x188] sm:$0xff]
    %v226 = vld [vmem:[%s175 + $0x190] sm:$0xff]
    %v227 = vld [vmem:[%s175 + $0x198] sm:$0xff]
    %v228 = vld [vmem:[%s175 + $0x1a0] sm:$0xff]
    %v229 = vld [vmem:[%s175 + $0x1a8] sm:$0xff]
    %v230 = vld [vmem:[%s175 + $0x1b0] sm:$0xff]
    %v231 = vld [vmem:[%s175 + $0x1b8] sm:$0xff]
    %v232 = vld [vmem:[%s175 + $0x1c0] sm:$0xff]
    %v233 = vld [vmem:[%s175 + $0x1c8] sm:$0xff]
    %v234 = vld [vmem:[%s175 + $0x1d0] sm:$0xff]
    %v235 = vld [vmem:[%s175 + $0x1d8] sm:$0xff]
    %v236 = vld [vmem:[%s175 + $0x1e0] sm:$0xff]
    %v237 = vld [vmem:[%s175 + $0x1e8] sm:$0xff]
    %v238 = vld [vmem:[%s175 + $0x1f0] sm:$0xff]
    %v239 = vld [vmem:[%s175 + $0x1f8] sm:$0xff]
    %240 = vmatprep.subr.mxu0 %v177
    %241 = vmatpush1.msra.mxu0 %v176
    %242 = vmatprep.subr.mxu0 %v179
    %243 = vmatpush1.msra.mxu0 %v178
    %244 = vmatprep.subr.mxu0 %v181
    %245 = vmatpush1.msra.mxu0 %v180
    %246 = vmatprep.subr.mxu0 %v183
    %247 = vmatpush1.msra.mxu0 %v182
    %248 = vmatprep.subr.mxu0 %v185
    %249 = vmatpush1.msra.mxu0 %v184
    %250 = vmatprep.subr.mxu0 %v187
    %251 = vmatpush1.msra.mxu0 %v186
    %252 = vmatprep.subr.mxu0 %v189
    %253 = vmatpush1.msra.mxu0 %v188
    %254 = vmatprep.subr.mxu0 %v191
    %255 = vmatpush1.msra.mxu0 %v190
    %256 = vmatprep.subr.mxu0 %v193
    %257 = vmatpush1.msra.mxu0 %v192
    %258 = vmatprep.subr.mxu0 %v195
    %259 = vmatpush1.msra.mxu0 %v194
    %260 = vmatprep.subr.mxu0 %v197
    %261 = vmatpush1.msra.mxu0 %v196
    %262 = vmatprep.subr.mxu0 %v199
    %263 = vmatpush1.msra.mxu0 %v198
    %264 = vmatprep.subr.mxu0 %v201
    %265 = vmatpush1.msra.mxu0 %v200
    %266 = vmatprep.subr.mxu0 %v203
    %267 = vmatpush1.msra.mxu0 %v202
    %268 = vmatprep.subr.mxu0 %v205
    %269 = vmatpush1.msra.mxu0 %v204
    %270 = vmatprep.subr.mxu0 %v207
    %271 = vmatpush1.msra.mxu0 %v206
    %272 = vmatprep.subr.mxu0 %v209
    %273 = vmatpush1.msra.mxu0 %v208
    %274 = vmatprep.subr.mxu0 %v211
    %275 = vmatpush1.msra.mxu0 %v210
    %276 = vmatprep.subr.mxu0 %v213
    %277 = vmatpush1.msra.mxu0 %v212
    %278 = vmatprep.subr.mxu0 %v215
    %279 = vmatpush1.msra.mxu0 %v214
    %280 = vmatprep.subr.mxu0 %v217
    %281 = vmatpush1.msra.mxu0 %v216
    %282 = vmatprep.subr.mxu0 %v219
    %283 = vmatpush1.msra.mxu0 %v218
    %284 = vmatprep.subr.mxu0 %v221
    %285 = vmatpush1.msra.mxu0 %v220
    %286 = vmatprep.subr.mxu0 %v223
    %287 = vmatpush1.msra.mxu0 %v222
    %288 = vmatprep.subr.mxu0 %v225
    %289 = vmatpush1.msra.mxu0 %v224
    %290 = vmatprep.subr.mxu0 %v227
    %291 = vmatpush1.msra.mxu0 %v226
    %292 = vmatprep.subr.mxu0 %v229
    %293 = vmatpush1.msra.mxu0 %v228
    %294 = vmatprep.subr.mxu0 %v231
    %295 = vmatpush1.msra.mxu0 %v230
    %296 = vmatprep.subr.mxu0 %v233
    %297 = vmatpush1.msra.mxu0 %v232
    %298 = vmatprep.subr.mxu0 %v235
    %299 = vmatpush1.msra.mxu0 %v234
    %300 = vmatprep.subr.mxu0 %v237
    %301 = vmatpush1.msra.mxu0 %v236
    %302 = vmatprep.subr.mxu0 %v239
    %303 = vmatpush1.msra.mxu0 %v238
    %304 = vmatprep.mubr.f32.mxu0 %v173
    %305 = vmatmul.mubr.f32.gmra.mrb[0].mxu0 %v171
    %v306 = vpop.f32.mrb[0].mxu0
    %v307 = vadd.f32 0.0, %v306
    %v308 = vpop.f32.mrb[0].mxu0
    %v309 = vadd.f32 0.0, %v308
    %310 = vdwg.mxu0
    %s311 = scalar_lea.vmem [#allocation5], 1024
    %v312 = vld [vmem:[%s311] sm:$0xff]
    %v313 = vld [vmem:[%s311 + $0x8] sm:$0xff]
    %v314 = vld [vmem:[%s311 + $0x10] sm:$0xff]
    %v315 = vld [vmem:[%s311 + $0x18] sm:$0xff]
    %v316 = vld [vmem:[%s311 + $0x20] sm:$0xff]
    %v317 = vld [vmem:[%s311 + $0x28] sm:$0xff]
    %v318 = vld [vmem:[%s311 + $0x30] sm:$0xff]
    %v319 = vld [vmem:[%s311 + $0x38] sm:$0xff]
    %v320 = vld [vmem:[%s311 + $0x40] sm:$0xff]
    %v321 = vld [vmem:[%s311 + $0x48] sm:$0xff]
    %v322 = vld [vmem:[%s311 + $0x50] sm:$0xff]
    %v323 = vld [vmem:[%s311 + $0x58] sm:$0xff]
    %v324 = vld [vmem:[%s311 + $0x60] sm:$0xff]
    %v325 = vld [vmem:[%s311 + $0x68] sm:$0xff]
    %v326 = vld [vmem:[%s311 + $0x70] sm:$0xff]
    %v327 = vld [vmem:[%s311 + $0x78] sm:$0xff]
    %v328 = vld [vmem:[%s311 + $0x80] sm:$0xff]
    %v329 = vld [vmem:[%s311 + $0x88] sm:$0xff]
    %v330 = vld [vmem:[%s311 + $0x90] sm:$0xff]
    %v331 = vld [vmem:[%s311 + $0x98] sm:$0xff]
    %v332 = vld [vmem:[%s311 + $0xa0] sm:$0xff]
    %v333 = vld [vmem:[%s311 + $0xa8] sm:$0xff]
    %v334 = vld [vmem:[%s311 + $0xb0] sm:$0xff]
    %v335 = vld [vmem:[%s311 + $0xb8] sm:$0xff]
    %v336 = vld [vmem:[%s311 + $0xc0] sm:$0xff]
    %v337 = vld [vmem:[%s311 + $0xc8] sm:$0xff]
    %v338 = vld [vmem:[%s311 + $0xd0] sm:$0xff]
    %v339 = vld [vmem:[%s311 + $0xd8] sm:$0xff]
    %v340 = vld [vmem:[%s311 + $0xe0] sm:$0xff]
    %v341 = vld [vmem:[%s311 + $0xe8] sm:$0xff]
    %v342 = vld [vmem:[%s311 + $0xf0] sm:$0xff]
    %v343 = vld [vmem:[%s311 + $0xf8] sm:$0xff]
    %v344 = vld [vmem:[%s311 + $0x100] sm:$0xff]
    %v345 = vld [vmem:[%s311 + $0x108] sm:$0xff]
    %v346 = vld [vmem:[%s311 + $0x110] sm:$0xff]
    %v347 = vld [vmem:[%s311 + $0x118] sm:$0xff]
    %v348 = vld [vmem:[%s311 + $0x120] sm:$0xff]
    %v349 = vld [vmem:[%s311 + $0x128] sm:$0xff]
    %v350 = vld [vmem:[%s311 + $0x130] sm:$0xff]
    %v351 = vld [vmem:[%s311 + $0x138] sm:$0xff]
    %v352 = vld [vmem:[%s311 + $0x140] sm:$0xff]
    %v353 = vld [vmem:[%s311 + $0x148] sm:$0xff]
    %v354 = vld [vmem:[%s311 + $0x150] sm:$0xff]
    %v355 = vld [vmem:[%s311 + $0x158] sm:$0xff]
    %v356 = vld [vmem:[%s311 + $0x160] sm:$0xff]
    %v357 = vld [vmem:[%s311 + $0x168] sm:$0xff]
    %v358 = vld [vmem:[%s311 + $0x170] sm:$0xff]
    %v359 = vld [vmem:[%s311 + $0x178] sm:$0xff]
    %v360 = vld [vmem:[%s311 + $0x180] sm:$0xff]
    %v361 = vld [vmem:[%s311 + $0x188] sm:$0xff]
    %v362 = vld [vmem:[%s311 + $0x190] sm:$0xff]
    %v363 = vld [vmem:[%s311 + $0x198] sm:$0xff]
    %v364 = vld [vmem:[%s311 + $0x1a0] sm:$0xff]
    %v365 = vld [vmem:[%s311 + $0x1a8] sm:$0xff]
    %v366 = vld [vmem:[%s311 + $0x1b0] sm:$0xff]
    %v367 = vld [vmem:[%s311 + $0x1b8] sm:$0xff]
    %v368 = vld [vmem:[%s311 + $0x1c0] sm:$0xff]
    %v369 = vld [vmem:[%s311 + $0x1c8] sm:$0xff]
    %v370 = vld [vmem:[%s311 + $0x1d0] sm:$0xff]
    %v371 = vld [vmem:[%s311 + $0x1d8] sm:$0xff]
    %v372 = vld [vmem:[%s311 + $0x1e0] sm:$0xff]
    %v373 = vld [vmem:[%s311 + $0x1e8] sm:$0xff]
    %v374 = vld [vmem:[%s311 + $0x1f0] sm:$0xff]
    %v375 = vld [vmem:[%s311 + $0x1f8] sm:$0xff]
    %376 = vmatprep.subr.mxu0 %v313
    %377 = vmatpush1.msra.mxu0 %v312
    %378 = vmatprep.subr.mxu0 %v315
    %379 = vmatpush1.msra.mxu0 %v314
    %380 = vmatprep.subr.mxu0 %v317
    %381 = vmatpush1.msra.mxu0 %v316
    %382 = vmatprep.subr.mxu0 %v319
    %383 = vmatpush1.msra.mxu0 %v318
    %384 = vmatprep.subr.mxu0 %v321
    %385 = vmatpush1.msra.mxu0 %v320
    %386 = vmatprep.subr.mxu0 %v323
    %387 = vmatpush1.msra.mxu0 %v322
    %388 = vmatprep.subr.mxu0 %v325
    %389 = vmatpush1.msra.mxu0 %v324
    %390 = vmatprep.subr.mxu0 %v327
    %391 = vmatpush1.msra.mxu0 %v326
    %392 = vmatprep.subr.mxu0 %v329
    %393 = vmatpush1.msra.mxu0 %v328
    %394 = vmatprep.subr.mxu0 %v331
    %395 = vmatpush1.msra.mxu0 %v330
    %396 = vmatprep.subr.mxu0 %v333
    %397 = vmatpush1.msra.mxu0 %v332
    %398 = vmatprep.subr.mxu0 %v335
    %399 = vmatpush1.msra.mxu0 %v334
    %400 = vmatprep.subr.mxu0 %v337
    %401 = vmatpush1.msra.mxu0 %v336
    %402 = vmatprep.subr.mxu0 %v339
    %403 = vmatpush1.msra.mxu0 %v338
    %404 = vmatprep.subr.mxu0 %v341
    %405 = vmatpush1.msra.mxu0 %v340
    %406 = vmatprep.subr.mxu0 %v343
    %407 = vmatpush1.msra.mxu0 %v342
    %408 = vmatprep.subr.mxu0 %v345
    %409 = vmatpush1.msra.mxu0 %v344
    %410 = vmatprep.subr.mxu0 %v347
    %411 = vmatpush1.msra.mxu0 %v346
    %412 = vmatprep.subr.mxu0 %v349
    %413 = vmatpush1.msra.mxu0 %v348
    %414 = vmatprep.subr.mxu0 %v351
    %415 = vmatpush1.msra.mxu0 %v350
    %416 = vmatprep.subr.mxu0 %v353
    %417 = vmatpush1.msra.mxu0 %v352
    %418 = vmatprep.subr.mxu0 %v355
    %419 = vmatpush1.msra.mxu0 %v354
    %420 = vmatprep.subr.mxu0 %v357
    %421 = vmatpush1.msra.mxu0 %v356
    %422 = vmatprep.subr.mxu0 %v359
    %423 = vmatpush1.msra.mxu0 %v358
    %424 = vmatprep.subr.mxu0 %v361
    %425 = vmatpush1.msra.mxu0 %v360
    %426 = vmatprep.subr.mxu0 %v363
    %427 = vmatpush1.msra.mxu0 %v362
    %428 = vmatprep.subr.mxu0 %v365
    %429 = vmatpush1.msra.mxu0 %v364
    %430 = vmatprep.subr.mxu0 %v367
    %431 = vmatpush1.msra.mxu0 %v366
    %432 = vmatprep.subr.mxu0 %v369
    %433 = vmatpush1.msra.mxu0 %v368
    %434 = vmatprep.subr.mxu0 %v371
    %435 = vmatpush1.msra.mxu0 %v370
    %436 = vmatprep.subr.mxu0 %v373
    %437 = vmatpush1.msra.mxu0 %v372
    %438 = vmatprep.subr.mxu0 %v375
    %439 = vmatpush1.msra.mxu0 %v374
    %440 = vmatprep.mubr.f32.mxu0 %v309
    %441 = vmatmul.mubr.f32.gmra.mrb[0].mxu0 %v307
    %v442 = vpop.f32.mrb[0].mxu0
    %v443 = vadd.f32 0.0, %v442
    %v444 = vpop.f32.mrb[0].mxu0
    %v445 = vadd.f32 0.0, %v444
    %446 = vdwg.mxu0
    %s447 = scalar_lea.vmem [#allocation5], 1536
    %v448 = vld [vmem:[%s447] sm:$0xff]
    %v449 = vld [vmem:[%s447 + $0x8] sm:$0xff]
    %v450 = vld [vmem:[%s447 + $0x10] sm:$0xff]
    %v451 = vld [vmem:[%s447 + $0x18] sm:$0xff]
    %v452 = vld [vmem:[%s447 + $0x20] sm:$0xff]
    %v453 = vld [vmem:[%s447 + $0x28] sm:$0xff]
    %v454 = vld [vmem:[%s447 + $0x30] sm:$0xff]
    %v455 = vld [vmem:[%s447 + $0x38] sm:$0xff]
    %v456 = vld [vmem:[%s447 + $0x40] sm:$0xff]
    %v457 = vld [vmem:[%s447 + $0x48] sm:$0xff]
    %v458 = vld [vmem:[%s447 + $0x50] sm:$0xff]
    %v459 = vld [vmem:[%s447 + $0x58] sm:$0xff]
    %v460 = vld [vmem:[%s447 + $0x60] sm:$0xff]
    %v461 = vld [vmem:[%s447 + $0x68] sm:$0xff]
    %v462 = vld [vmem:[%s447 + $0x70] sm:$0xff]
    %v463 = vld [vmem:[%s447 + $0x78] sm:$0xff]
    %v464 = vld [vmem:[%s447 + $0x80] sm:$0xff]
    %v465 = vld [vmem:[%s447 + $0x88] sm:$0xff]
    %v466 = vld [vmem:[%s447 + $0x90] sm:$0xff]
    %v467 = vld [vmem:[%s447 + $0x98] sm:$0xff]
    %v468 = vld [vmem:[%s447 + $0xa0] sm:$0xff]
    %v469 = vld [vmem:[%s447 + $0xa8] sm:$0xff]
    %v470 = vld [vmem:[%s447 + $0xb0] sm:$0xff]
    %v471 = vld [vmem:[%s447 + $0xb8] sm:$0xff]
    %v472 = vld [vmem:[%s447 + $0xc0] sm:$0xff]
    %v473 = vld [vmem:[%s447 + $0xc8] sm:$0xff]
    %v474 = vld [vmem:[%s447 + $0xd0] sm:$0xff]
    %v475 = vld [vmem:[%s447 + $0xd8] sm:$0xff]
    %v476 = vld [vmem:[%s447 + $0xe0] sm:$0xff]
    %v477 = vld [vmem:[%s447 + $0xe8] sm:$0xff]
    %v478 = vld [vmem:[%s447 + $0xf0] sm:$0xff]
    %v479 = vld [vmem:[%s447 + $0xf8] sm:$0xff]
    %v480 = vld [vmem:[%s447 + $0x100] sm:$0xff]
    %v481 = vld [vmem:[%s447 + $0x108] sm:$0xff]
    %v482 = vld [vmem:[%s447 + $0x110] sm:$0xff]
    %v483 = vld [vmem:[%s447 + $0x118] sm:$0xff]
    %v484 = vld [vmem:[%s447 + $0x120] sm:$0xff]
    %v485 = vld [vmem:[%s447 + $0x128] sm:$0xff]
    %v486 = vld [vmem:[%s447 + $0x130] sm:$0xff]
    %v487 = vld [vmem:[%s447 + $0x138] sm:$0xff]
    %v488 = vld [vmem:[%s447 + $0x140] sm:$0xff]
    %v489 = vld [vmem:[%s447 + $0x148] sm:$0xff]
    %v490 = vld [vmem:[%s447 + $0x150] sm:$0xff]
    %v491 = vld [vmem:[%s447 + $0x158] sm:$0xff]
    %v492 = vld [vmem:[%s447 + $0x160] sm:$0xff]
    %v493 = vld [vmem:[%s447 + $0x168] sm:$0xff]
    %v494 = vld [vmem:[%s447 + $0x170] sm:$0xff]
    %v495 = vld [vmem:[%s447 + $0x178] sm:$0xff]
    %v496 = vld [vmem:[%s447 + $0x180] sm:$0xff]
    %v497 = vld [vmem:[%s447 + $0x188] sm:$0xff]
    %v498 = vld [vmem:[%s447 + $0x190] sm:$0xff]
    %v499 = vld [vmem:[%s447 + $0x198] sm:$0xff]
    %v500 = vld [vmem:[%s447 + $0x1a0] sm:$0xff]
    %v501 = vld [vmem:[%s447 + $0x1a8] sm:$0xff]
    %v502 = vld [vmem:[%s447 + $0x1b0] sm:$0xff]
    %v503 = vld [vmem:[%s447 + $0x1b8] sm:$0xff]
    %v504 = vld [vmem:[%s447 + $0x1c0] sm:$0xff]
    %v505 = vld [vmem:[%s447 + $0x1c8] sm:$0xff]
    %v506 = vld [vmem:[%s447 + $0x1d0] sm:$0xff]
    %v507 = vld [vmem:[%s447 + $0x1d8] sm:$0xff]
    %v508 = vld [vmem:[%s447 + $0x1e0] sm:$0xff]
    %v509 = vld [vmem:[%s447 + $0x1e8] sm:$0xff]
    %v510 = vld [vmem:[%s447 + $0x1f0] sm:$0xff]
    %v511 = vld [vmem:[%s447 + $0x1f8] sm:$0xff]
    %512 = vmatprep.subr.mxu0 %v449
    %513 = vmatpush1.msra.mxu0 %v448
    %514 = vmatprep.subr.mxu0 %v451
    %515 = vmatpush1.msra.mxu0 %v450
    %516 = vmatprep.subr.mxu0 %v453
    %517 = vmatpush1.msra.mxu0 %v452
    %518 = vmatprep.subr.mxu0 %v455
    %519 = vmatpush1.msra.mxu0 %v454
    %520 = vmatprep.subr.mxu0 %v457
    %521 = vmatpush1.msra.mxu0 %v456
    %522 = vmatprep.subr.mxu0 %v459
    %523 = vmatpush1.msra.mxu0 %v458
    %524 = vmatprep.subr.mxu0 %v461
    %525 = vmatpush1.msra.mxu0 %v460
    %526 = vmatprep.subr.mxu0 %v463
    %527 = vmatpush1.msra.mxu0 %v462
    %528 = vmatprep.subr.mxu0 %v465
    %529 = vmatpush1.msra.mxu0 %v464
    %530 = vmatprep.subr.mxu0 %v467
    %531 = vmatpush1.msra.mxu0 %v466
    %532 = vmatprep.subr.mxu0 %v469
    %533 = vmatpush1.msra.mxu0 %v468
    %534 = vmatprep.subr.mxu0 %v471
    %535 = vmatpush1.msra.mxu0 %v470
    %536 = vmatprep.subr.mxu0 %v473
    %537 = vmatpush1.msra.mxu0 %v472
    %538 = vmatprep.subr.mxu0 %v475
    %539 = vmatpush1.msra.mxu0 %v474
    %540 = vmatprep.subr.mxu0 %v477
    %541 = vmatpush1.msra.mxu0 %v476
    %542 = vmatprep.subr.mxu0 %v479
    %543 = vmatpush1.msra.mxu0 %v478
    %544 = vmatprep.subr.mxu0 %v481
    %545 = vmatpush1.msra.mxu0 %v480
    %546 = vmatprep.subr.mxu0 %v483
    %547 = vmatpush1.msra.mxu0 %v482
    %548 = vmatprep.subr.mxu0 %v485
    %549 = vmatpush1.msra.mxu0 %v484
    %550 = vmatprep.subr.mxu0 %v487
    %551 = vmatpush1.msra.mxu0 %v486
    %552 = vmatprep.subr.mxu0 %v489
    %553 = vmatpush1.msra.mxu0 %v488
    %554 = vmatprep.subr.mxu0 %v491
    %555 = vmatpush1.msra.mxu0 %v490
    %556 = vmatprep.subr.mxu0 %v493
    %557 = vmatpush1.msra.mxu0 %v492
    %558 = vmatprep.subr.mxu0 %v495
    %559 = vmatpush1.msra.mxu0 %v494
    %560 = vmatprep.subr.mxu0 %v497
    %561 = vmatpush1.msra.mxu0 %v496
    %562 = vmatprep.subr.mxu0 %v499
    %563 = vmatpush1.msra.mxu0 %v498
    %564 = vmatprep.subr.mxu0 %v501
    %565 = vmatpush1.msra.mxu0 %v500
    %566 = vmatprep.subr.mxu0 %v503
    %567 = vmatpush1.msra.mxu0 %v502
    %568 = vmatprep.subr.mxu0 %v505
    %569 = vmatpush1.msra.mxu0 %v504
    %570 = vmatprep.subr.mxu0 %v507
    %571 = vmatpush1.msra.mxu0 %v506
    %572 = vmatprep.subr.mxu0 %v509
    %573 = vmatpush1.msra.mxu0 %v508
    %574 = vmatprep.subr.mxu0 %v511
    %575 = vmatpush1.msra.mxu0 %v510
    %576 = vmatprep.mubr.f32.mxu0 %v445
    %577 = vmatmul.mubr.f32.gmra.mrb[0].mxu0 %v443
    %v578 = vpop.f32.mrb[0].mxu0
    %v579 = vadd.f32 0.0, %v578
    %v580 = vpop.f32.mrb[0].mxu0
    %v581 = vadd.f32 0.0, %v580
    %582 = vdwg.mxu0
    %s583 = scalar_lea.vmem [#allocation5], 2048
    %v584 = vld [vmem:[%s583] sm:$0xff]
    %v585 = vld [vmem:[%s583 + $0x8] sm:$0xff]
    %v586 = vld [vmem:[%s583 + $0x10] sm:$0xff]
    %v587 = vld [vmem:[%s583 + $0x18] sm:$0xff]
    %v588 = vld [vmem:[%s583 + $0x20] sm:$0xff]
    %v589 = vld [vmem:[%s583 + $0x28] sm:$0xff]
    %v590 = vld [vmem:[%s583 + $0x30] sm:$0xff]
    %v591 = vld [vmem:[%s583 + $0x38] sm:$0xff]
    %v592 = vld [vmem:[%s583 + $0x40] sm:$0xff]
    %v593 = vld [vmem:[%s583 + $0x48] sm:$0xff]
    %v594 = vld [vmem:[%s583 + $0x50] sm:$0xff]
    %v595 = vld [vmem:[%s583 + $0x58] sm:$0xff]
    %v596 = vld [vmem:[%s583 + $0x60] sm:$0xff]
    %v597 = vld [vmem:[%s583 + $0x68] sm:$0xff]
    %v598 = vld [vmem:[%s583 + $0x70] sm:$0xff]
    %v599 = vld [vmem:[%s583 + $0x78] sm:$0xff]
    %v600 = vld [vmem:[%s583 + $0x80] sm:$0xff]
    %v601 = vld [vmem:[%s583 + $0x88] sm:$0xff]
    %v602 = vld [vmem:[%s583 + $0x90] sm:$0xff]
    %v603 = vld [vmem:[%s583 + $0x98] sm:$0xff]
    %v604 = vld [vmem:[%s583 + $0xa0] sm:$0xff]
    %v605 = vld [vmem:[%s583 + $0xa8] sm:$0xff]
    %v606 = vld [vmem:[%s583 + $0xb0] sm:$0xff]
    %v607 = vld [vmem:[%s583 + $0xb8] sm:$0xff]
    %v608 = vld [vmem:[%s583 + $0xc0] sm:$0xff]
    %v609 = vld [vmem:[%s583 + $0xc8] sm:$0xff]
    %v610 = vld [vmem:[%s583 + $0xd0] sm:$0xff]
    %v611 = vld [vmem:[%s583 + $0xd8] sm:$0xff]
    %v612 = vld [vmem:[%s583 + $0xe0] sm:$0xff]
    %v613 = vld [vmem:[%s583 + $0xe8] sm:$0xff]
    %v614 = vld [vmem:[%s583 + $0xf0] sm:$0xff]
    %v615 = vld [vmem:[%s583 + $0xf8] sm:$0xff]
    %v616 = vld [vmem:[%s583 + $0x100] sm:$0xff]
    %v617 = vld [vmem:[%s583 + $0x108] sm:$0xff]
    %v618 = vld [vmem:[%s583 + $0x110] sm:$0xff]
    %v619 = vld [vmem:[%s583 + $0x118] sm:$0xff]
    %v620 = vld [vmem:[%s583 + $0x120] sm:$0xff]
    %v621 = vld [vmem:[%s583 + $0x128] sm:$0xff]
    %v622 = vld [vmem:[%s583 + $0x130] sm:$0xff]
    %v623 = vld [vmem:[%s583 + $0x138] sm:$0xff]
    %v624 = vld [vmem:[%s583 + $0x140] sm:$0xff]
    %v625 = vld [vmem:[%s583 + $0x148] sm:$0xff]
    %v626 = vld [vmem:[%s583 + $0x150] sm:$0xff]
    %v627 = vld [vmem:[%s583 + $0x158] sm:$0xff]
    %v628 = vld [vmem:[%s583 + $0x160] sm:$0xff]
    %v629 = vld [vmem:[%s583 + $0x168] sm:$0xff]
    %v630 = vld [vmem:[%s583 + $0x170] sm:$0xff]
    %v631 = vld [vmem:[%s583 + $0x178] sm:$0xff]
    %v632 = vld [vmem:[%s583 + $0x180] sm:$0xff]
    %v633 = vld [vmem:[%s583 + $0x188] sm:$0xff]
    %v634 = vld [vmem:[%s583 + $0x190] sm:$0xff]
    %v635 = vld [vmem:[%s583 + $0x198] sm:$0xff]
    %v636 = vld [vmem:[%s583 + $0x1a0] sm:$0xff]
    %v637 = vld [vmem:[%s583 + $0x1a8] sm:$0xff]
    %v638 = vld [vmem:[%s583 + $0x1b0] sm:$0xff]
    %v639 = vld [vmem:[%s583 + $0x1b8] sm:$0xff]
    %v640 = vld [vmem:[%s583 + $0x1c0] sm:$0xff]
    %v641 = vld [vmem:[%s583 + $0x1c8] sm:$0xff]
    %v642 = vld [vmem:[%s583 + $0x1d0] sm:$0xff]
    %v643 = vld [vmem:[%s583 + $0x1d8] sm:$0xff]
    %v644 = vld [vmem:[%s583 + $0x1e0] sm:$0xff]
    %v645 = vld [vmem:[%s583 + $0x1e8] sm:$0xff]
    %v646 = vld [vmem:[%s583 + $0x1f0] sm:$0xff]
    %v647 = vld [vmem:[%s583 + $0x1f8] sm:$0xff]
    %648 = vmatprep.subr.mxu0 %v585
    %649 = vmatpush1.msra.mxu0 %v584
    %650 = vmatprep.subr.mxu0 %v587
    %651 = vmatpush1.msra.mxu0 %v586
    %652 = vmatprep.subr.mxu0 %v589
    %653 = vmatpush1.msra.mxu0 %v588
    %654 = vmatprep.subr.mxu0 %v591
    %655 = vmatpush1.msra.mxu0 %v590
    %656 = vmatprep.subr.mxu0 %v593
    %657 = vmatpush1.msra.mxu0 %v592
    %658 = vmatprep.subr.mxu0 %v595
    %659 = vmatpush1.msra.mxu0 %v594
    %660 = vmatprep.subr.mxu0 %v597
    %661 = vmatpush1.msra.mxu0 %v596
    %662 = vmatprep.subr.mxu0 %v599
    %663 = vmatpush1.msra.mxu0 %v598
    %664 = vmatprep.subr.mxu0 %v601
    %665 = vmatpush1.msra.mxu0 %v600
    %666 = vmatprep.subr.mxu0 %v603
    %667 = vmatpush1.msra.mxu0 %v602
    %668 = vmatprep.subr.mxu0 %v605
    %669 = vmatpush1.msra.mxu0 %v604
    %670 = vmatprep.subr.mxu0 %v607
    %671 = vmatpush1.msra.mxu0 %v606
    %672 = vmatprep.subr.mxu0 %v609
    %673 = vmatpush1.msra.mxu0 %v608
    %674 = vmatprep.subr.mxu0 %v611
    %675 = vmatpush1.msra.mxu0 %v610
    %676 = vmatprep.subr.mxu0 %v613
    %677 = vmatpush1.msra.mxu0 %v612
    %678 = vmatprep.subr.mxu0 %v615
    %679 = vmatpush1.msra.mxu0 %v614
    %680 = vmatprep.subr.mxu0 %v617
    %681 = vmatpush1.msra.mxu0 %v616
    %682 = vmatprep.subr.mxu0 %v619
    %683 = vmatpush1.msra.mxu0 %v618
    %684 = vmatprep.subr.mxu0 %v621
    %685 = vmatpush1.msra.mxu0 %v620
    %686 = vmatprep.subr.mxu0 %v623
    %687 = vmatpush1.msra.mxu0 %v622
    %688 = vmatprep.subr.mxu0 %v625
    %689 = vmatpush1.msra.mxu0 %v624
    %690 = vmatprep.subr.mxu0 %v627
    %691 = vmatpush1.msra.mxu0 %v626
    %692 = vmatprep.subr.mxu0 %v629
    %693 = vmatpush1.msra.mxu0 %v628
    %694 = vmatprep.subr.mxu0 %v631
    %695 = vmatpush1.msra.mxu0 %v630
    %696 = vmatprep.subr.mxu0 %v633
    %697 = vmatpush1.msra.mxu0 %v632
    %698 = vmatprep.subr.mxu0 %v635
    %699 = vmatpush1.msra.mxu0 %v634
    %700 = vmatprep.subr.mxu0 %v637
    %701 = vmatpush1.msra.mxu0 %v636
    %702 = vmatprep.subr.mxu0 %v639
    %703 = vmatpush1.msra.mxu0 %v638
    %704 = vmatprep.subr.mxu0 %v641
    %705 = vmatpush1.msra.mxu0 %v640
    %706 = vmatprep.subr.mxu0 %v643
    %707 = vmatpush1.msra.mxu0 %v642
    %708 = vmatprep.subr.mxu0 %v645
    %709 = vmatpush1.msra.mxu0 %v644
    %710 = vmatprep.subr.mxu0 %v647
    %711 = vmatpush1.msra.mxu0 %v646
    %712 = vmatprep.mubr.f32.mxu0 %v581
    %713 = vmatmul.mubr.f32.gmra.mrb[0].mxu0 %v579
    %v714 = vpop.f32.mrb[0].mxu0
    %v715 = vadd.f32 0.0, %v714
    %v716 = vpop.f32.mrb[0].mxu0
    %v717 = vadd.f32 0.0, %v716
    %718 = vdwg.mxu0
    %719 = vst [vmem:[#allocation7] sm:$0xff] %v715
    %720 = vst [vmem:[#allocation7 + $0x8] sm:$0xff] %v717
    // Predicated region
    $region18: #{tpu_custom_call.1} parent=1 // pred_check
      _
    $region19: #{tpu_custom_call.1} parent=1 // pred_check_branch
      %722 = sbr.rel (0) target = $region21
    $region20: #{tpu_custom_call.1} parent=1 // pred_region
      %s724 = ssub.s32 256, 256
      %725 = vsyncadd [#allocation4], %s724
      %s727 = sshll.u32 [#allocation7], 4
      %s728 = int_to_ptr.vmem [resolvable:$true] %s727
      %730 = dma.vmem_to_hbm [thread:$0]  %s728, 256, %s2, [#allocation4]
    $region21: #{tpu_custom_call.1} parent=1 // pred_fallthru
      _
    // Predicated region
    $region22: #{tpu_custom_call.1} parent=1 // pred_check
      _
    $region23: #{tpu_custom_call.1} parent=1 // pred_check_branch
      %732 = sbr.rel (0) target = $region25
    $region24: #{tpu_custom_call.1} parent=1 // pred_region
      %733 = dma.done [#allocation4], 256
    $region25: #{tpu_custom_call.1} parent=1 // pred_fallthru
      _
    %734 = vsyncpa [#allocation3], 1
    %735 = vsyncpa [#allocation6], 1
    %736 = vsyncpa [#allocation4], 1

</llo_original>
